<compile_context>
chip_gen: v5e
topology: v5e:2x2
jax: 0.10.0
libtpu: 0.0.40
codegen_flags: <defaults>
</compile_context>

<pallas_src>
import functools

import jax
import jax.numpy as jnp
from jax import lax
from jax.experimental import pallas as pl
from jax.experimental.pallas import tpu as pltpu


def _round_up(n, m):
    return ((n + m - 1) // m) * m


def _birnn_kernel(xcat_ref, wih_ref, bih_ref, whh_ref, wlf_ref, wlb_ref,
                  bl_ref, out_ref, xw_ref, h_ref, *, seq_len, batch_padded,
                  rec_dtype):
    """Bidirectional RNN + linear head, single invocation, all refs in VMEM.

    xcat_ref : (T*Bp, 2D)  row i*Bp+b = [x(t=i,b) | x(t=T-1-i,b)], compute dtype
    wih_ref  : (2D, HP)    block-diag [[W_ih_f, 0], [0, W_ih_b]] lane-padded
    bih_ref  : (1, HP)     [b_ih_f+b_hh_f | b_ih_b+b_hh_b | 0-pad], f32
    whh_ref  : (HP, HP)    block-diag [[W_hh_f, 0], [0, W_hh_b]] lane-padded, f32
    wlf_ref  : (HP, CP)    rows [0:H]  = W_lin fwd half, rest zero
    wlb_ref  : (HP, CP)    rows [H:2H] = W_lin bwd half, rest zero
    bl_ref   : (1, CP)     linear bias, zero-padded, f32
    out_ref  : (T*Bp, CP)  f32 output, row i*Bp+b = y(t=i, b)
    xw_ref   : (T*Bp, HP)  f32 scratch: fused input projections
    h_ref    : (T*Bp, HP)  f32 scratch: [h_fwd(i) | h_bwd(T-1-i)] per row block
    """
    T, Bp = seq_len, batch_padded
    HP = whh_ref.shape[0]
    f32 = jnp.float32

    # ---- 1. Single fused, lane-dense input projection (one MXU matmul). ----
    xw_ref[...] = (jnp.dot(xcat_ref[...], wih_ref[...],
                           preferred_element_type=f32)
                   + bih_ref[...].astype(f32))

    # ---- 2. Fused bidirectional recurrence (block-diagonal W_hh). ----------
    # Carry h = [h_fwd | h_bwd] (Bp, HP); step i consumes row block i, which
    # already holds the forward projection at time i and the backward
    # projection at time T-1-i, so each step is: one contiguous load, one MXU
    # dot, one tanh, one full-width store.  Fully unrolled: T is a small
    # static constant, so every slice below is static.
    # TODO(synk): for genome-scale T switch to lax.fori_loop(unroll=4..8) or a
    # time-chunked grid to bound instruction footprint and vreg live ranges.
    whh = whh_ref[...].astype(rec_dtype)                       # (HP, HP)
    h = jnp.zeros((Bp, HP), f32)
    for i in range(T):
        r = i * Bp
        pre = xw_ref[r:r + Bp, :] + jnp.dot(
            h.astype(rec_dtype), whh, preferred_element_type=f32)
        h = jnp.tanh(pre)
        h_ref[r:r + Bp, :] = h

    # ---- 3. Deferred Linear head: two big matmuls, reversal undone in the
    # final stores (full (Bp, CP) lane-dense tiles, off the critical path). ---
    cdt = wlf_ref.dtype
    h_all = h_ref[...].astype(cdt)                             # (T*Bp, HP)
    yf = jnp.dot(h_all, wlf_ref[...], preferred_element_type=f32)
    yb = jnp.dot(h_all, wlb_ref[...], preferred_element_type=f32)
    bl = bl_ref[...].astype(f32)
    for i in range(T):
        rf = i * Bp                  # output time i
        rb = (T - 1 - i) * Bp        # bwd hidden for time i lives at row T-1-i
        out_ref[rf:rf + Bp, :] = yf[rf:rf + Bp, :] + yb[rb:rb + Bp, :] + bl


def genome_variant_rnn_forward(x, params, compute_dtype=jnp.float32,
                               recurrent_matmul_dtype=jnp.float32):
    """x: (B, T, D) float32  ->  (B, T, num_classes) float32.

    compute_dtype: MXU input dtype for x @ W_ih and the Linear head.
    recurrent_matmul_dtype: MXU input dtype for the serial h @ W_hh dot.
    Accumulation, tanh and the carried hidden state are always f32.
    """
    B, T, D = x.shape
    H = params["w_hh_f"].shape[0]
    C = params["b_lin"].shape[-1]
    Bp = _round_up(B, 8)          # sublane-multiple batch -> full-tile stores
    HP = _round_up(2 * H, 128)    # lane-dense combined hidden width
    CP = _round_up(C, 128)        # lane-dense output width
    f32 = jnp.float32

    # ---- Layout prep in XLA (one cheap pass). -------------------------------
    # Time-major, batch padded with zero rows; backward half fed reversed-time
    # x so the kernel's combined scratch needs no per-step shuffling.
    x_tm = jnp.transpose(x, (1, 0, 2)).astype(f32)            # (T, B, D)
    if Bp != B:
        x_tm = jnp.pad(x_tm, ((0, 0), (0, Bp - B), (0, 0)))
    x_cat = jnp.concatenate([x_tm, x_tm[::-1]], axis=-1)      # (T, Bp, 2D)
    x_cat = x_cat.reshape(T * Bp, 2 * D).astype(compute_dtype)

    # Fused block-diagonal weights / padded biases (one-time prep, f32 masters).
    wih = jnp.zeros((2 * D, HP), f32)
    wih = wih.at[:D, :H].set(params["w_ih_f"].astype(f32))
    wih = wih.at[D:, H:2 * H].set(params["w_ih_b"].astype(f32))
    bih = jnp.zeros((1, HP), f32)
    bih = bih.at[:, :H].set(params["b_f"].astype(f32))
    bih = bih.at[:, H:2 * H].set(params["b_b"].astype(f32))
    # NOTE: on v5e (128-wide MXU) the block-diagonal fusion is only free while
    # HP <= 128 (H <= 64); for larger H split the directions into two dots.
    whh = jnp.zeros((HP, HP), f32)
    whh = whh.at[:H, :H].set(params["w_hh_f"].astype(f32))
    whh = whh.at[H:2 * H, H:2 * H].set(params["w_hh_b"].astype(f32))
    wlf = jnp.zeros((HP, CP), f32).at[:H, :C].set(params["w_lin_f"].astype(f32))
    wlb = jnp.zeros((HP, CP), f32).at[H:2 * H, :C].set(
        params["w_lin_b"].astype(f32))
    bl = jnp.zeros((1, CP), f32).at[:, :C].set(params["b_lin"].astype(f32))

    cdt = compute_dtype
    vmem = pl.BlockSpec(memory_space=pltpu.MemorySpace.VMEM)

    # VMEM budget: actual footprint with generous headroom, capped so the same
    # kernel stays well inside v7x's 64 MiB per-TC VMEM.
    est_bytes = 4 * (x_cat.size + wih.size + bih.size + whh.size + wlf.size
                     + wlb.size + bl.size + 2 * T * Bp * HP + T * Bp * CP)
    vmem_limit = min(max(2 * est_bytes, 4 << 20), 40 << 20)

    out2d = pl.pallas_call(
        functools.partial(_birnn_kernel, seq_len=T, batch_padded=Bp,
                          rec_dtype=recurrent_matmul_dtype),
        out_shape=jax.ShapeDtypeStruct((T * Bp, CP), f32),
        in_specs=[vmem] * 7,
        out_specs=vmem,
        scratch_shapes=[
            pltpu.VMEM((T * Bp, HP), f32),   # fused input projections
            pltpu.VMEM((T * Bp, HP), f32),   # combined hidden states
        ],
        compiler_params=pltpu.CompilerParams(vmem_limit_bytes=vmem_limit),
    )(x_cat, wih.astype(cdt), bih, whh, wlf.astype(cdt), wlb.astype(cdt), bl)

    out = out2d.reshape(T, Bp, CP)[:, :B, :C]                  # strip padding
    return jnp.transpose(out, (1, 0, 2))                       # (B, T, C)


def init_params(key, input_size, hidden_size, num_classes):
    """Deterministic init mimicking PyTorch's U(-1/sqrt(H), 1/sqrt(H))."""
    D, H, C = input_size, hidden_size, num_classes
    ks = jax.random.split(key, 11)
    s = 1.0 / jnp.sqrt(jnp.float32(H))

    def u(k, shape):
        return jax.random.uniform(k, shape, jnp.float32, -s, s)

    w_lin = u(ks[8], (2 * H, C))  # transposed Linear weight (2H, C)
    return {
        "w_ih_f": u(ks[0], (D, H)),
        "w_hh_f": u(ks[1], (H, H)),
        "b_f": (u(ks[2], (1, H)) + u(ks[3], (1, H))),   # b_ih + b_hh (fwd)
        "w_ih_b": u(ks[4], (D, H)),
        "w_hh_b": u(ks[5], (H, H)),
        "b_b": (u(ks[6], (1, H)) + u(ks[7], (1, H))),   # b_ih + b_hh (bwd)
        "w_lin_f": w_lin[:H, :],
        "w_lin_b": w_lin[H:, :],
        "b_lin": u(ks[9], (1, C)),
    }


def reference_forward(x, params):
    """Pure-JAX reference with identical semantics (for correctness check)."""
    B, T, _ = x.shape
    H = params["w_hh_f"].shape[0]
    x_tm = jnp.transpose(x, (1, 0, 2))  # (T, B, D)

    def make_step(w_ih, w_hh, b):
        def step(h, xt):
            h_new = jnp.tanh(xt @ w_ih + b[0] + h @ w_hh)
            return h_new, h_new
        return step

    h0 = jnp.zeros((B, H), jnp.float32)
    _, hf = lax.scan(
        make_step(params["w_ih_f"], params["w_hh_f"], params["b_f"]), h0, x_tm)
    _, hb = lax.scan(
        make_step(params["w_ih_b"], params["w_hh_b"], params["b_b"]), h0,
        x_tm[::-1])
    hb = hb[::-1]
    out_tm = hf @ params["w_lin_f"] + hb @ params["w_lin_b"] + params["b_lin"][0]
    return jnp.transpose(out_tm, (1, 0, 2))


if __name__ == "__main__":
    B, T, D, H, C = 2, 8, 16, 32, 4   # batch, seq, input_size, hidden, classes

    key = jax.random.PRNGKey(0)
    kx, kp = jax.random.split(key)
    x = jax.random.normal(kx, (B, T, D), jnp.float32)
    params = init_params(kp, D, H, C)

    ref = reference_forward(x, params)

    # f32 MXU path: must match the pure-JAX reference tightly.
    out = genome_variant_rnn_forward(x, params)
    out = jax.block_until_ready(out)
    assert out.shape == (B, T, C), out.shape
    err_f32 = float(jnp.max(jnp.abs(out - ref)))
    assert err_f32 < 1e-4, f"f32 kernel mismatch vs reference: {err_f32}"

    # bf16 MXU-input path (x/W_ih/head AND the recurrence dot in bf16,
    # f32 accumulation + f32 tanh/carry): looser tolerance.
    out_bf16 = genome_variant_rnn_forward(
        x, params, compute_dtype=jnp.bfloat16,
        recurrent_matmul_dtype=jnp.bfloat16)
    out_bf16 = jax.block_until_ready(out_bf16)
    err_bf16 = float(jnp.max(jnp.abs(out_bf16 - ref)))
    assert err_bf16 < 2e-1, f"bf16 kernel mismatch vs reference: {err_bf16}"

    print("KERNEL_OK")
</pallas_src>

<mosaic_0001>
module attributes {stable_mosaic.version = 11 : i64} {
  func.func @_birnn_kernel(%arg0: memref<64x32xf32, #tpu.memory_space<vmem>>, %arg1: memref<32x128xf32, #tpu.memory_space<vmem>>, %arg2: memref<1x128xf32, #tpu.memory_space<vmem>>, %arg3: memref<128x128xf32, #tpu.memory_space<vmem>>, %arg4: memref<128x128xf32, #tpu.memory_space<vmem>>, %arg5: memref<128x128xf32, #tpu.memory_space<vmem>>, %arg6: memref<1x128xf32, #tpu.memory_space<vmem>>, %arg7: memref<64x128xf32, #tpu.memory_space<vmem>>, %arg8: memref<64x128xf32, #tpu.memory_space<vmem>>, %arg9: memref<64x128xf32, #tpu.memory_space<vmem>>) attributes {dimension_semantics = [], scalar_prefetch = 0 : i64, scratch_operands = 2 : i64, tpu.core_type = #tpu.core_type<tc>} {
    %c0 = arith.constant 0 : index
    %c0_0 = arith.constant 0 : index
    %0 = vector.load %arg0[%c0, %c0_0] : memref<64x32xf32, #tpu.memory_space<vmem>>, vector<64x32xf32>
    %c0_1 = arith.constant 0 : index
    %c0_2 = arith.constant 0 : index
    %1 = vector.load %arg1[%c0_1, %c0_2] : memref<32x128xf32, #tpu.memory_space<vmem>>, vector<32x128xf32>
    %cst = arith.constant dense<0.000000e+00> : vector<64x128xf32>
    %2 = tpu.matmul %0, %1, %cst {dimension_numbers = #tpu.dot_dimension_numbers<[1], [0], [0], [1], [0, 0, 1, 1], [], []>} : vector<64x32xf32>, vector<32x128xf32>, vector<64x128xf32> -> vector<64x128xf32>
    %c0_3 = arith.constant 0 : index
    %c0_4 = arith.constant 0 : index
    %3 = vector.load %arg2[%c0_3, %c0_4] : memref<1x128xf32, #tpu.memory_space<vmem>>, vector<1x128xf32>
    %4 = vector.broadcast %3 : vector<1x128xf32> to vector<64x128xf32>
    %5 = arith.addf %2, %4 : vector<64x128xf32>
    %c0_5 = arith.constant 0 : index
    %c0_6 = arith.constant 0 : index
    %6 = vector.load %arg8[%c0_5, %c0_6] : memref<64x128xf32, #tpu.memory_space<vmem>>, vector<64x128xf32>
    tpu.vector_store %arg8[%c0_5, %c0_6], %5 {strides = array<i32>} : memref<64x128xf32, #tpu.memory_space<vmem>>, vector<64x128xf32>,
    %c0_7 = arith.constant 0 : index
    %c0_8 = arith.constant 0 : index
    %7 = vector.load %arg3[%c0_7, %c0_8] : memref<128x128xf32, #tpu.memory_space<vmem>>, vector<128x128xf32>
    %cst_9 = arith.constant 0.000000e+00 : f32
    %8 = vector.broadcast %cst_9 : f32 to vector<8x128xf32>
    %c0_10 = arith.constant 0 : index
    %c0_11 = arith.constant 0 : index
    %9 = vector.load %arg8[%c0_10, %c0_11] : memref<64x128xf32, #tpu.memory_space<vmem>>, vector<8x128xf32>
    %cst_12 = arith.constant dense<0.000000e+00> : vector<8x128xf32>
    %10 = tpu.matmul %8, %7, %cst_12 {dimension_numbers = #tpu.dot_dimension_numbers<[1], [0], [0], [1], [0, 0, 1, 1], [], []>} : vector<8x128xf32>, vector<128x128xf32>, vector<8x128xf32> -> vector<8x128xf32>
    %11 = arith.addf %9, %10 : vector<8x128xf32>
    %12 = math.tanh %11 : vector<8x128xf32>
    %c0_13 = arith.constant 0 : index
    %c0_14 = arith.constant 0 : index
    %13 = vector.load %arg9[%c0_13, %c0_14] : memref<64x128xf32, #tpu.memory_space<vmem>>, vector<8x128xf32>
    tpu.vector_store %arg9[%c0_13, %c0_14], %12 {strides = array<i32>} : memref<64x128xf32, #tpu.memory_space<vmem>>, vector<8x128xf32>,
    %c8 = arith.constant 8 : index
    %c0_15 = arith.constant 0 : index
    %14 = vector.load %arg8[%c8, %c0_15] : memref<64x128xf32, #tpu.memory_space<vmem>>, vector<8x128xf32>
    %cst_16 = arith.constant dense<0.000000e+00> : vector<8x128xf32>
    %15 = tpu.matmul %12, %7, %cst_16 {dimension_numbers = #tpu.dot_dimension_numbers<[1], [0], [0], [1], [0, 0, 1, 1], [], []>} : vector<8x128xf32>, vector<128x128xf32>, vector<8x128xf32> -> vector<8x128xf32>
    %16 = arith.addf %14, %15 : vector<8x128xf32>
    %17 = math.tanh %16 : vector<8x128xf32>
    %c8_17 = arith.constant 8 : index
    %c0_18 = arith.constant 0 : index
    %18 = vector.load %arg9[%c8_17, %c0_18] : memref<64x128xf32, #tpu.memory_space<vmem>>, vector<8x128xf32>
    tpu.vector_store %arg9[%c8_17, %c0_18], %17 {strides = array<i32>} : memref<64x128xf32, #tpu.memory_space<vmem>>, vector<8x128xf32>,
    %c16 = arith.constant 16 : index
    %c0_19 = arith.constant 0 : index
    %19 = vector.load %arg8[%c16, %c0_19] : memref<64x128xf32, #tpu.memory_space<vmem>>, vector<8x128xf32>
    %cst_20 = arith.constant dense<0.000000e+00> : vector<8x128xf32>
    %20 = tpu.matmul %17, %7, %cst_20 {dimension_numbers = #tpu.dot_dimension_numbers<[1], [0], [0], [1], [0, 0, 1, 1], [], []>} : vector<8x128xf32>, vector<128x128xf32>, vector<8x128xf32> -> vector<8x128xf32>
    %21 = arith.addf %19, %20 : vector<8x128xf32>
    %22 = math.tanh %21 : vector<8x128xf32>
    %c16_21 = arith.constant 16 : index
    %c0_22 = arith.constant 0 : index
    %23 = vector.load %arg9[%c16_21, %c0_22] : memref<64x128xf32, #tpu.memory_space<vmem>>, vector<8x128xf32>
    tpu.vector_store %arg9[%c16_21, %c0_22], %22 {strides = array<i32>} : memref<64x128xf32, #tpu.memory_space<vmem>>, vector<8x128xf32>,
    %c24 = arith.constant 24 : index
    %c0_23 = arith.constant 0 : index
    %24 = vector.load %arg8[%c24, %c0_23] : memref<64x128xf32, #tpu.memory_space<vmem>>, vector<8x128xf32>
    %cst_24 = arith.constant dense<0.000000e+00> : vector<8x128xf32>
    %25 = tpu.matmul %22, %7, %cst_24 {dimension_numbers = #tpu.dot_dimension_numbers<[1], [0], [0], [1], [0, 0, 1, 1], [], []>} : vector<8x128xf32>, vector<128x128xf32>, vector<8x128xf32> -> vector<8x128xf32>
    %26 = arith.addf %24, %25 : vector<8x128xf32>
    %27 = math.tanh %26 : vector<8x128xf32>
    %c24_25 = arith.constant 24 : index
    %c0_26 = arith.constant 0 : index
    %28 = vector.load %arg9[%c24_25, %c0_26] : memref<64x128xf32, #tpu.memory_space<vmem>>, vector<8x128xf32>
    tpu.vector_store %arg9[%c24_25, %c0_26], %27 {strides = array<i32>} : memref<64x128xf32, #tpu.memory_space<vmem>>, vector<8x128xf32>,
    %c32 = arith.constant 32 : index
    %c0_27 = arith.constant 0 : index
    %29 = vector.load %arg8[%c32, %c0_27] : memref<64x128xf32, #tpu.memory_space<vmem>>, vector<8x128xf32>
    %cst_28 = arith.constant dense<0.000000e+00> : vector<8x128xf32>
    %30 = tpu.matmul %27, %7, %cst_28 {dimension_numbers = #tpu.dot_dimension_numbers<[1], [0], [0], [1], [0, 0, 1, 1], [], []>} : vector<8x128xf32>, vector<128x128xf32>, vector<8x128xf32> -> vector<8x128xf32>
    %31 = arith.addf %29, %30 : vector<8x128xf32>
    %32 = math.tanh %31 : vector<8x128xf32>
    %c32_29 = arith.constant 32 : index
    %c0_30 = arith.constant 0 : index
    %33 = vector.load %arg9[%c32_29, %c0_30] : memref<64x128xf32, #tpu.memory_space<vmem>>, vector<8x128xf32>
    tpu.vector_store %arg9[%c32_29, %c0_30], %32 {strides = array<i32>} : memref<64x128xf32, #tpu.memory_space<vmem>>, vector<8x128xf32>,
    %c40 = arith.constant 40 : index
    %c0_31 = arith.constant 0 : index
    %34 = vector.load %arg8[%c40, %c0_31] : memref<64x128xf32, #tpu.memory_space<vmem>>, vector<8x128xf32>
    %cst_32 = arith.constant dense<0.000000e+00> : vector<8x128xf32>
    %35 = tpu.matmul %32, %7, %cst_32 {dimension_numbers = #tpu.dot_dimension_numbers<[1], [0], [0], [1], [0, 0, 1, 1], [], []>} : vector<8x128xf32>, vector<128x128xf32>, vector<8x128xf32> -> vector<8x128xf32>
    %36 = arith.addf %34, %35 : vector<8x128xf32>
    %37 = math.tanh %36 : vector<8x128xf32>
    %c40_33 = arith.constant 40 : index
    %c0_34 = arith.constant 0 : index
    %38 = vector.load %arg9[%c40_33, %c0_34] : memref<64x128xf32, #tpu.memory_space<vmem>>, vector<8x128xf32>
    tpu.vector_store %arg9[%c40_33, %c0_34], %37 {strides = array<i32>} : memref<64x128xf32, #tpu.memory_space<vmem>>, vector<8x128xf32>,
    %c48 = arith.constant 48 : index
    %c0_35 = arith.constant 0 : index
    %39 = vector.load %arg8[%c48, %c0_35] : memref<64x128xf32, #tpu.memory_space<vmem>>, vector<8x128xf32>
    %cst_36 = arith.constant dense<0.000000e+00> : vector<8x128xf32>
    %40 = tpu.matmul %37, %7, %cst_36 {dimension_numbers = #tpu.dot_dimension_numbers<[1], [0], [0], [1], [0, 0, 1, 1], [], []>} : vector<8x128xf32>, vector<128x128xf32>, vector<8x128xf32> -> vector<8x128xf32>
    %41 = arith.addf %39, %40 : vector<8x128xf32>
    %42 = math.tanh %41 : vector<8x128xf32>
    %c48_37 = arith.constant 48 : index
    %c0_38 = arith.constant 0 : index
    %43 = vector.load %arg9[%c48_37, %c0_38] : memref<64x128xf32, #tpu.memory_space<vmem>>, vector<8x128xf32>
    tpu.vector_store %arg9[%c48_37, %c0_38], %42 {strides = array<i32>} : memref<64x128xf32, #tpu.memory_space<vmem>>, vector<8x128xf32>,
    %c56 = arith.constant 56 : index
    %c0_39 = arith.constant 0 : index
    %44 = vector.load %arg8[%c56, %c0_39] : memref<64x128xf32, #tpu.memory_space<vmem>>, vector<8x128xf32>
    %cst_40 = arith.constant dense<0.000000e+00> : vector<8x128xf32>
    %45 = tpu.matmul %42, %7, %cst_40 {dimension_numbers = #tpu.dot_dimension_numbers<[1], [0], [0], [1], [0, 0, 1, 1], [], []>} : vector<8x128xf32>, vector<128x128xf32>, vector<8x128xf32> -> vector<8x128xf32>
    %46 = arith.addf %44, %45 : vector<8x128xf32>
    %47 = math.tanh %46 : vector<8x128xf32>
    %c56_41 = arith.constant 56 : index
    %c0_42 = arith.constant 0 : index
    %48 = vector.load %arg9[%c56_41, %c0_42] : memref<64x128xf32, #tpu.memory_space<vmem>>, vector<8x128xf32>
    tpu.vector_store %arg9[%c56_41, %c0_42], %47 {strides = array<i32>} : memref<64x128xf32, #tpu.memory_space<vmem>>, vector<8x128xf32>,
    %c0_43 = arith.constant 0 : index
    %c0_44 = arith.constant 0 : index
    %49 = vector.load %arg9[%c0_43, %c0_44] : memref<64x128xf32, #tpu.memory_space<vmem>>, vector<64x128xf32>
    %c0_45 = arith.constant 0 : index
    %c0_46 = arith.constant 0 : index
    %50 = vector.load %arg4[%c0_45, %c0_46] : memref<128x128xf32, #tpu.memory_space<vmem>>, vector<128x128xf32>
    %cst_47 = arith.constant dense<0.000000e+00> : vector<64x128xf32>
    %51 = tpu.matmul %49, %50, %cst_47 {dimension_numbers = #tpu.dot_dimension_numbers<[1], [0], [0], [1], [0, 0, 1, 1], [], []>} : vector<64x128xf32>, vector<128x128xf32>, vector<64x128xf32> -> vector<64x128xf32>
    %c0_48 = arith.constant 0 : index
    %c0_49 = arith.constant 0 : index
    %52 = vector.load %arg5[%c0_48, %c0_49] : memref<128x128xf32, #tpu.memory_space<vmem>>, vector<128x128xf32>
    %cst_50 = arith.constant dense<0.000000e+00> : vector<64x128xf32>
    %53 = tpu.matmul %49, %52, %cst_50 {dimension_numbers = #tpu.dot_dimension_numbers<[1], [0], [0], [1], [0, 0, 1, 1], [], []>} : vector<64x128xf32>, vector<128x128xf32>, vector<64x128xf32> -> vector<64x128xf32>
    %c0_51 = arith.constant 0 : index
    %c0_52 = arith.constant 0 : index
    %54 = vector.load %arg6[%c0_51, %c0_52] : memref<1x128xf32, #tpu.memory_space<vmem>>, vector<1x128xf32>
    %55 = vector.extract_strided_slice %51 {offsets = [0, 0], sizes = [8, 128], strides = [1, 1]} : vector<64x128xf32> to vector<8x128xf32>
    %56 = vector.extract_strided_slice %53 {offsets = [56, 0], sizes = [8, 128], strides = [1, 1]} : vector<64x128xf32> to vector<8x128xf32>
    %57 = arith.addf %55, %56 : vector<8x128xf32>
    %58 = vector.broadcast %54 : vector<1x128xf32> to vector<8x128xf32>
    %59 = arith.addf %57, %58 : vector<8x128xf32>
    %c0_53 = arith.constant 0 : index
    %c0_54 = arith.constant 0 : index
    %60 = vector.load %arg7[%c0_53, %c0_54] : memref<64x128xf32, #tpu.memory_space<vmem>>, vector<8x128xf32>
    tpu.vector_store %arg7[%c0_53, %c0_54], %59 {strides = array<i32>} : memref<64x128xf32, #tpu.memory_space<vmem>>, vector<8x128xf32>,
    %61 = vector.extract_strided_slice %51 {offsets = [8, 0], sizes = [8, 128], strides = [1, 1]} : vector<64x128xf32> to vector<8x128xf32>
    %62 = vector.extract_strided_slice %53 {offsets = [48, 0], sizes = [8, 128], strides = [1, 1]} : vector<64x128xf32> to vector<8x128xf32>
    %63 = arith.addf %61, %62 : vector<8x128xf32>
    %64 = vector.broadcast %54 : vector<1x128xf32> to vector<8x128xf32>
    %65 = arith.addf %63, %64 : vector<8x128xf32>
    %c8_55 = arith.constant 8 : index
    %c0_56 = arith.constant 0 : index
    %66 = vector.load %arg7[%c8_55, %c0_56] : memref<64x128xf32, #tpu.memory_space<vmem>>, vector<8x128xf32>
    tpu.vector_store %arg7[%c8_55, %c0_56], %65 {strides = array<i32>} : memref<64x128xf32, #tpu.memory_space<vmem>>, vector<8x128xf32>,
    %67 = vector.extract_strided_slice %51 {offsets = [16, 0], sizes = [8, 128], strides = [1, 1]} : vector<64x128xf32> to vector<8x128xf32>
    %68 = vector.extract_strided_slice %53 {offsets = [40, 0], sizes = [8, 128], strides = [1, 1]} : vector<64x128xf32> to vector<8x128xf32>
    %69 = arith.addf %67, %68 : vector<8x128xf32>
    %70 = vector.broadcast %54 : vector<1x128xf32> to vector<8x128xf32>
    %71 = arith.addf %69, %70 : vector<8x128xf32>
    %c16_57 = arith.constant 16 : index
    %c0_58 = arith.constant 0 : index
    %72 = vector.load %arg7[%c16_57, %c0_58] : memref<64x128xf32, #tpu.memory_space<vmem>>, vector<8x128xf32>
    tpu.vector_store %arg7[%c16_57, %c0_58], %71 {strides = array<i32>} : memref<64x128xf32, #tpu.memory_space<vmem>>, vector<8x128xf32>,
    %73 = vector.extract_strided_slice %51 {offsets = [24, 0], sizes = [8, 128], strides = [1, 1]} : vector<64x128xf32> to vector<8x128xf32>
    %74 = vector.extract_strided_slice %53 {offsets = [32, 0], sizes = [8, 128], strides = [1, 1]} : vector<64x128xf32> to vector<8x128xf32>
    %75 = arith.addf %73, %74 : vector<8x128xf32>
    %76 = vector.broadcast %54 : vector<1x128xf32> to vector<8x128xf32>
    %77 = arith.addf %75, %76 : vector<8x128xf32>
    %c24_59 = arith.constant 24 : index
    %c0_60 = arith.constant 0 : index
    %78 = vector.load %arg7[%c24_59, %c0_60] : memref<64x128xf32, #tpu.memory_space<vmem>>, vector<8x128xf32>
    tpu.vector_store %arg7[%c24_59, %c0_60], %77 {strides = array<i32>} : memref<64x128xf32, #tpu.memory_space<vmem>>, vector<8x128xf32>,
    %79 = vector.extract_strided_slice %51 {offsets = [32, 0], sizes = [8, 128], strides = [1, 1]} : vector<64x128xf32> to vector<8x128xf32>
    %80 = vector.extract_strided_slice %53 {offsets = [24, 0], sizes = [8, 128], strides = [1, 1]} : vector<64x128xf32> to vector<8x128xf32>
    %81 = arith.addf %79, %80 : vector<8x128xf32>
    %82 = vector.broadcast %54 : vector<1x128xf32> to vector<8x128xf32>
    %83 = arith.addf %81, %82 : vector<8x128xf32>
    %c32_61 = arith.constant 32 : index
    %c0_62 = arith.constant 0 : index
    %84 = vector.load %arg7[%c32_61, %c0_62] : memref<64x128xf32, #tpu.memory_space<vmem>>, vector<8x128xf32>
    tpu.vector_store %arg7[%c32_61, %c0_62], %83 {strides = array<i32>} : memref<64x128xf32, #tpu.memory_space<vmem>>, vector<8x128xf32>,
    %85 = vector.extract_strided_slice %51 {offsets = [40, 0], sizes = [8, 128], strides = [1, 1]} : vector<64x128xf32> to vector<8x128xf32>
    %86 = vector.extract_strided_slice %53 {offsets = [16, 0], sizes = [8, 128], strides = [1, 1]} : vector<64x128xf32> to vector<8x128xf32>
    %87 = arith.addf %85, %86 : vector<8x128xf32>
    %88 = vector.broadcast %54 : vector<1x128xf32> to vector<8x128xf32>
    %89 = arith.addf %87, %88 : vector<8x128xf32>
    %c40_63 = arith.constant 40 : index
    %c0_64 = arith.constant 0 : index
    %90 = vector.load %arg7[%c40_63, %c0_64] : memref<64x128xf32, #tpu.memory_space<vmem>>, vector<8x128xf32>
    tpu.vector_store %arg7[%c40_63, %c0_64], %89 {strides = array<i32>} : memref<64x128xf32, #tpu.memory_space<vmem>>, vector<8x128xf32>,
    %91 = vector.extract_strided_slice %51 {offsets = [48, 0], sizes = [8, 128], strides = [1, 1]} : vector<64x128xf32> to vector<8x128xf32>
    %92 = vector.extract_strided_slice %53 {offsets = [8, 0], sizes = [8, 128], strides = [1, 1]} : vector<64x128xf32> to vector<8x128xf32>
    %93 = arith.addf %91, %92 : vector<8x128xf32>
    %94 = vector.broadcast %54 : vector<1x128xf32> to vector<8x128xf32>
    %95 = arith.addf %93, %94 : vector<8x128xf32>
    %c48_65 = arith.constant 48 : index
    %c0_66 = arith.constant 0 : index
    %96 = vector.load %arg7[%c48_65, %c0_66] : memref<64x128xf32, #tpu.memory_space<vmem>>, vector<8x128xf32>
    tpu.vector_store %arg7[%c48_65, %c0_66], %95 {strides = array<i32>} : memref<64x128xf32, #tpu.memory_space<vmem>>, vector<8x128xf32>,
    %97 = vector.extract_strided_slice %51 {offsets = [56, 0], sizes = [8, 128], strides = [1, 1]} : vector<64x128xf32> to vector<8x128xf32>
    %98 = vector.extract_strided_slice %53 {offsets = [0, 0], sizes = [8, 128], strides = [1, 1]} : vector<64x128xf32> to vector<8x128xf32>
    %99 = arith.addf %97, %98 : vector<8x128xf32>
    %100 = vector.broadcast %54 : vector<1x128xf32> to vector<8x128xf32>
    %101 = arith.addf %99, %100 : vector<8x128xf32>
    %c56_67 = arith.constant 56 : index
    %c0_68 = arith.constant 0 : index
    %102 = vector.load %arg7[%c56_67, %c0_68] : memref<64x128xf32, #tpu.memory_space<vmem>>, vector<8x128xf32>
    tpu.vector_store %arg7[%c56_67, %c0_68], %101 {strides = array<i32>} : memref<64x128xf32, #tpu.memory_space<vmem>>, vector<8x128xf32>,
    return
  }
}

</mosaic_0001>

<llo_original>
// kernel: tpu_custom_call.1
$region0: #{tpu_custom_call.1}
  #allocation0 [shape = 'u32[]', space=smem, size = 0x4, offset = 0x4, fixed_abs, tag = 'smem constant byte address 0x4 - core index']
  #allocation1 [shape = 'u32[72,128]{1,0:T(1,128)}', space=vmem, size = 0x9000, scoped, tag = 'internal scratch']
  #allocation2 [shape = 'f32[64,128]{1,0:T(8,128)}', space=vmem, size = 0x8000, scoped, tag = 'scratch operand']
  #allocation3 [shape = 'f32[64,128]{1,0:T(8,128)}', space=vmem, size = 0x8000, scoped, tag = 'scratch operand']
  %s0 = inlined_call_operand.vmem [shape: f32[64,32], index: 0, kind: input, shape index: {}]
  %s1 = inlined_call_operand.vmem [shape: f32[32,128], index: 1, kind: input, shape index: {}]
  %s2 = inlined_call_operand.vmem [shape: f32[1,128], index: 2, kind: input, shape index: {}]
  %s3 = inlined_call_operand.hbm [shape: f32[128,128], index: 3, kind: input, shape index: {}]
  %s4 = inlined_call_operand.hbm [shape: f32[128,128], index: 4, kind: input, shape index: {}]
  %s5 = inlined_call_operand.hbm [shape: f32[128,128], index: 5, kind: input, shape index: {}]
  %s6 = inlined_call_operand.vmem [shape: f32[1,128], index: 6, kind: input, shape index: {}]
  %s7 = inlined_call_operand.hbm [shape: f32[64,128], index: 7, kind: output, shape index: {}]
  %s8 = sld [smem:[#allocation0]]
  $region50: #{tpu_custom_call.1} parent=0
    _
  %s10 = ssub.s32 1, %s8
  %s11 = scalar_select 0, %s10, %s8
  $region1: #{tpu_custom_call.1} parent=0
    #allocation4 [shape = 'u8[65536]{0}', space=vmem, size = 0x10000, scoped, tag = 'input window, operand 3, single buffered']
    #allocation5 [shape = 's32[1]{0}', space=sflag, size = 0x4, scoped, tag = 'scoped memory for tpu_custom_call.1']
    #allocation6 [shape = 's32[1]{0}', space=sflag, size = 0x4, scoped, tag = 'scoped memory for tpu_custom_call.1']
    #allocation7 [shape = 'u8[65536]{0}', space=vmem, size = 0x10000, scoped, tag = 'input window, operand 4, single buffered']
    #allocation8 [shape = 's32[1]{0}', space=sflag, size = 0x4, scoped, tag = 'scoped memory for tpu_custom_call.1']
    #allocation9 [shape = 'u8[65536]{0}', space=vmem, size = 0x10000, scoped, tag = 'input window, operand 5, single buffered']
    #allocation10 [shape = 'u8[32768]{0}', space=vmem, size = 0x8000, scoped, tag = 'output window, operand 0, single buffered']
    %12 = vsyncpa [#allocation5], 0
    %13 = vsyncpa [#allocation8], 0
    %14 = vsyncpa [#allocation6], 0
    // Predicated region
    $region2: #{tpu_custom_call.1} parent=1 // pred_check
      _
    $region3: #{tpu_custom_call.1} parent=1 // pred_check_branch
      %16 = sbr.rel (0) target = $region5
    $region4: #{tpu_custom_call.1} parent=1 // pred_region
      _
    $region5: #{tpu_custom_call.1} parent=1 // pred_fallthru
      _
    // Predicated region
    $region6: #{tpu_custom_call.1} parent=1 // pred_check
      _
    $region7: #{tpu_custom_call.1} parent=1 // pred_check_branch
      %18 = sbr.rel (0) target = $region9
    $region8: #{tpu_custom_call.1} parent=1 // pred_region
      _
    $region9: #{tpu_custom_call.1} parent=1 // pred_fallthru
      _
    // Predicated region
    $region10: #{tpu_custom_call.1} parent=1 // pred_check
      _
    $region11: #{tpu_custom_call.1} parent=1 // pred_check_branch
      %20 = sbr.rel (0) target = $region13
    $region12: #{tpu_custom_call.1} parent=1 // pred_region
      _
    $region13: #{tpu_custom_call.1} parent=1 // pred_fallthru
      _
    // Predicated region
    $region14: #{tpu_custom_call.1} parent=1 // pred_check
      _
    $region15: #{tpu_custom_call.1} parent=1 // pred_check_branch
      %22 = sbr.rel (0) target = $region17
    $region16: #{tpu_custom_call.1} parent=1 // pred_region
      %24 = vsyncadd [#allocation5], 0
      %s25 = sshll.u32 %s3, 4
      %s26 = int_to_ptr.hbm [resolvable:$true] %s25
      %s27 = sshll.u32 [#allocation4], 4
      %s28 = int_to_ptr.vmem [resolvable:$true] %s27
      %33 = dma.hbm_to_vmem [thread:$0]  %s26, 2048, %s28, [#allocation5], 128, 128, 8
    $region17: #{tpu_custom_call.1} parent=1 // pred_fallthru
      _
    // Predicated region
    $region18: #{tpu_custom_call.1} parent=1 // pred_check
      _
    $region19: #{tpu_custom_call.1} parent=1 // pred_check_branch
      %35 = sbr.rel (0) target = $region21
    $region20: #{tpu_custom_call.1} parent=1 // pred_region
      %37 = vsyncadd [#allocation8], 0
      %s38 = sshll.u32 %s4, 4
      %s39 = int_to_ptr.hbm [resolvable:$true] %s38
      %s40 = sshll.u32 [#allocation7], 4
      %s41 = int_to_ptr.vmem [resolvable:$true] %s40
      %46 = dma.hbm_to_vmem [thread:$0]  %s39, 2048, %s41, [#allocation8], 128, 128, 8
    $region21: #{tpu_custom_call.1} parent=1 // pred_fallthru
      _
    // Predicated region
    $region22: #{tpu_custom_call.1} parent=1 // pred_check
      _
    $region23: #{tpu_custom_call.1} parent=1 // pred_check_branch
      %48 = sbr.rel (0) target = $region25
    $region24: #{tpu_custom_call.1} parent=1 // pred_region
      %50 = vsyncadd [#allocation8], 0
      %s51 = sshll.u32 %s5, 4
      %s52 = int_to_ptr.hbm [resolvable:$true] %s51
      %s53 = sshll.u32 [#allocation9], 4
      %s54 = int_to_ptr.vmem [resolvable:$true] %s53
      %59 = dma.hbm_to_vmem [thread:$0]  %s52, 2048, %s54, [#allocation8], 128, 128, 8
    $region25: #{tpu_custom_call.1} parent=1 // pred_fallthru
      _
    // Predicated region
    $region26: #{tpu_custom_call.1} parent=1 // pred_check
      _
    $region27: #{tpu_custom_call.1} parent=1 // pred_check_branch
      %61 = sbr.rel (0) target = $region29
    $region28: #{tpu_custom_call.1} parent=1 // pred_region
      _
    $region29: #{tpu_custom_call.1} parent=1 // pred_fallthru
      _
    // Predicated region
    $region30: #{tpu_custom_call.1} parent=1 // pred_check
      _
    $region31: #{tpu_custom_call.1} parent=1 // pred_check_branch
      %63 = sbr.rel (0) target = $region33
    $region32: #{tpu_custom_call.1} parent=1 // pred_region
      %65 = dma.done [#allocation5], 2048
    $region33: #{tpu_custom_call.1} parent=1 // pred_fallthru
      _
    // Predicated region
    $region34: #{tpu_custom_call.1} parent=1 // pred_check
      _
    $region35: #{tpu_custom_call.1} parent=1 // pred_check_branch
      %67 = sbr.rel (0) target = $region37
    $region36: #{tpu_custom_call.1} parent=1 // pred_region
      %69 = dma.done [#allocation8], 2048
    $region37: #{tpu_custom_call.1} parent=1 // pred_fallthru
      _
    // Predicated region
    $region38: #{tpu_custom_call.1} parent=1 // pred_check
      _
    $region39: #{tpu_custom_call.1} parent=1 // pred_check_branch
      %71 = sbr.rel (0) target = $region41
    $region40: #{tpu_custom_call.1} parent=1 // pred_region
      %73 = dma.done [#allocation8], 2048
    $region41: #{tpu_custom_call.1} parent=1 // pred_fallthru
      _
    %v74 = vld [vmem:[%s0] sm:$0xff]
    %v75 = vld [vmem:[%s0 + $0x8] sm:$0xff]
    %v76 = vld [vmem:[%s0 + $0x10] sm:$0xff]
    %v77 = vld [vmem:[%s0 + $0x18] sm:$0xff]
    %v78 = vld [vmem:[%s0 + $0x20] sm:$0xff]
    %v79 = vld [vmem:[%s0 + $0x28] sm:$0xff]
    %v80 = vld [vmem:[%s0 + $0x30] sm:$0xff]
    %v81 = vld [vmem:[%s0 + $0x38] sm:$0xff]
    %v82 = vld [vmem:[%s1] sm:$0xff]
    %v83 = vld [vmem:[%s1 + $0x8] sm:$0xff]
    %v84 = vld [vmem:[%s1 + $0x10] sm:$0xff]
    %v85 = vld [vmem:[%s1 + $0x18] sm:$0xff]
    %v86 = vld [vmem:[%s2] sm:$0x1]
    %v88 = vperm.slane %v86, 0
    %vm90 = vcmask 261120
    %v92 = vsel %vm90, %v74, 0
    %v95 = vsel %vm90, %v75, 0
    %v98 = vsel %vm90, %v76, 0
    %v101 = vsel %vm90, %v77, 0
    %v104 = vsel %vm90, %v78, 0
    %v107 = vsel %vm90, %v79, 0
    %v110 = vsel %vm90, %v80, 0
    %v113 = vsel %vm90, %v81, 0
    %115 = vmatpush.msra.mxu0 0.0
    %116 = vmatpush.msra.mxu0 0.0
    %117 = vmatpush.msra.mxu0 0.0
    %118 = vmatpush.msra.mxu0 0.0
    %119 = vmatpush.msra.mxu0 0.0
    %120 = vmatpush.msra.mxu0 0.0
    %121 = vmatpush.msra.mxu0 0.0
    %122 = vmatpush.msra.mxu0 0.0
    %123 = vmatpush.msra.mxu0 0.0
    %124 = vmatpush.msra.mxu0 0.0
    %125 = vmatpush.msra.mxu0 0.0
    %126 = vmatpush.msra.mxu0 0.0
    %127 = vmatpush.msra.mxu0 %v85
    %128 = vmatpush.msra.mxu0 %v84
    %129 = vmatpush.msra.mxu0 %v83
    %130 = vmatpush.msra.mxu0 %v82
    %131 = vmatmul.f32.gmra.mxu0 %v92
    %v132 = vpop.f32.mrf.mxu0
    %v133 = vadd.f32 %v88, %v132
    %134 = vmatmul.f32.gmra.mxu0 %v95
    %v135 = vpop.f32.mrf.mxu0
    %v136 = vadd.f32 %v88, %v135
    %137 = vmatmul.f32.gmra.mxu0 %v98
    %v138 = vpop.f32.mrf.mxu0
    %v139 = vadd.f32 %v88, %v138
    %140 = vmatmul.f32.gmra.mxu0 %v101
    %v141 = vpop.f32.mrf.mxu0
    %v142 = vadd.f32 %v88, %v141
    %143 = vmatmul.f32.gmra.mxu0 %v104
    %v144 = vpop.f32.mrf.mxu0
    %v145 = vadd.f32 %v88, %v144
    %146 = vmatmul.f32.gmra.mxu0 %v107
    %v147 = vpop.f32.mrf.mxu0
    %v148 = vadd.f32 %v88, %v147
    %149 = vmatmul.f32.gmra.mxu0 %v110
    %v150 = vpop.f32.mrf.mxu0
    %v151 = vadd.f32 %v88, %v150
    %152 = vmatmul.f32.gmra.mxu0 %v113
    %v153 = vpop.f32.mrf.mxu0
    %v154 = vadd.f32 %v88, %v153
    %155 = vdwg.mxu0
    %156 = vst [vmem:[#allocation2] sm:$0xff] %v133
    %157 = vst [vmem:[#allocation2 + $0x8] sm:$0xff] %v136
    %158 = vst [vmem:[#allocation2 + $0x10] sm:$0xff] %v139
    %159 = vst [vmem:[#allocation2 + $0x18] sm:$0xff] %v142
    %160 = vst [vmem:[#allocation2 + $0x20] sm:$0xff] %v145
    %161 = vst [vmem:[#allocation2 + $0x28] sm:$0xff] %v148
    %162 = vst [vmem:[#allocation2 + $0x30] sm:$0xff] %v151
    %163 = vst [vmem:[#allocation2 + $0x38] sm:$0xff] %v154
    %v164 = vld [vmem:[#allocation4] sm:$0xff]
    %v165 = vld [vmem:[#allocation4 + $0x8] sm:$0xff]
    %v166 = vld [vmem:[#allocation4 + $0x10] sm:$0xff]
    %v167 = vld [vmem:[#allocation4 + $0x18] sm:$0xff]
    %v168 = vld [vmem:[#allocation4 + $0x20] sm:$0xff]
    %v169 = vld [vmem:[#allocation4 + $0x28] sm:$0xff]
    %v170 = vld [vmem:[#allocation4 + $0x30] sm:$0xff]
    %v171 = vld [vmem:[#allocation4 + $0x38] sm:$0xff]
    %v172 = vld [vmem:[#allocation4 + $0x40] sm:$0xff]
    %v173 = vld [vmem:[#allocation4 + $0x48] sm:$0xff]
    %v174 = vld [vmem:[#allocation4 + $0x50] sm:$0xff]
    %v175 = vld [vmem:[#allocation4 + $0x58] sm:$0xff]
    %v176 = vld [vmem:[#allocation4 + $0x60] sm:$0xff]
    %v177 = vld [vmem:[#allocation4 + $0x68] sm:$0xff]
    %v178 = vld [vmem:[#allocation4 + $0x70] sm:$0xff]
    %v179 = vld [vmem:[#allocation4 + $0x78] sm:$0xff]
    %v180 = vld [vmem:[#allocation2] sm:$0xff]
    %181 = vmatpush.msra.mxu0 %v179
    %182 = vmatpush.msra.mxu0 %v178
    %183 = vmatpush.msra.mxu0 %v177
    %184 = vmatpush.msra.mxu0 %v176
    %185 = vmatpush.msra.mxu0 %v175
    %186 = vmatpush.msra.mxu0 %v174
    %187 = vmatpush.msra.mxu0 %v173
    %188 = vmatpush.msra.mxu0 %v172
    %189 = vmatpush.msra.mxu0 %v171
    %190 = vmatpush.msra.mxu0 %v170
    %191 = vmatpush.msra.mxu0 %v169
    %192 = vmatpush.msra.mxu0 %v168
    %193 = vmatpush.msra.mxu0 %v167
    %194 = vmatpush.msra.mxu0 %v166
    %195 = vmatpush.msra.mxu0 %v165
    %196 = vmatpush.msra.mxu0 %v164
    %197 = vmatmul.f32.gmra.mxu0 0.0
    %v198 = vpop.f32.mrf.mxu0
    %v199 = vadd.f32 0.0, %v198
    %200 = vdwg.mxu0
    %v201 = vadd.f32 %v180, %v199
    %v202 = vtanh.pop %v201
    %203 = vst [vmem:[#allocation3] sm:$0xff] %v202
    %v204 = vld [vmem:[#allocation2 + $0x8] sm:$0xff]
    %205 = vmatpush.msra.mxu0 %v179
    %206 = vmatpush.msra.mxu0 %v178
    %207 = vmatpush.msra.mxu0 %v177
    %208 = vmatpush.msra.mxu0 %v176
    %209 = vmatpush.msra.mxu0 %v175
    %210 = vmatpush.msra.mxu0 %v174
    %211 = vmatpush.msra.mxu0 %v173
    %212 = vmatpush.msra.mxu0 %v172
    %213 = vmatpush.msra.mxu0 %v171
    %214 = vmatpush.msra.mxu0 %v170
    %215 = vmatpush.msra.mxu0 %v169
    %216 = vmatpush.msra.mxu0 %v168
    %217 = vmatpush.msra.mxu0 %v167
    %218 = vmatpush.msra.mxu0 %v166
    %219 = vmatpush.msra.mxu0 %v165
    %220 = vmatpush.msra.mxu0 %v164
    %221 = vmatmul.f32.gmra.mxu0 %v202
    %v222 = vpop.f32.mrf.mxu0
    %v223 = vadd.f32 0.0, %v222
    %224 = vdwg.mxu0
    %v225 = vadd.f32 %v204, %v223
    %v226 = vtanh.pop %v225
    %227 = vst [vmem:[#allocation3 + $0x8] sm:$0xff] %v226
    %v228 = vld [vmem:[#allocation2 + $0x10] sm:$0xff]
    %229 = vmatpush.msra.mxu0 %v179
    %230 = vmatpush.msra.mxu0 %v178
    %231 = vmatpush.msra.mxu0 %v177
    %232 = vmatpush.msra.mxu0 %v176
    %233 = vmatpush.msra.mxu0 %v175
    %234 = vmatpush.msra.mxu0 %v174
    %235 = vmatpush.msra.mxu0 %v173
    %236 = vmatpush.msra.mxu0 %v172
    %237 = vmatpush.msra.mxu0 %v171
    %238 = vmatpush.msra.mxu0 %v170
    %239 = vmatpush.msra.mxu0 %v169
    %240 = vmatpush.msra.mxu0 %v168
    %241 = vmatpush.msra.mxu0 %v167
    %242 = vmatpush.msra.mxu0 %v166
    %243 = vmatpush.msra.mxu0 %v165
    %244 = vmatpush.msra.mxu0 %v164
    %245 = vmatmul.f32.gmra.mxu0 %v226
    %v246 = vpop.f32.mrf.mxu0
    %v247 = vadd.f32 0.0, %v246
    %248 = vdwg.mxu0
    %v249 = vadd.f32 %v228, %v247
    %v250 = vtanh.pop %v249
    %251 = vst [vmem:[#allocation3 + $0x10] sm:$0xff] %v250
    %v252 = vld [vmem:[#allocation2 + $0x18] sm:$0xff]
    %253 = vmatpush.msra.mxu0 %v179
    %254 = vmatpush.msra.mxu0 %v178
    %255 = vmatpush.msra.mxu0 %v177
    %256 = vmatpush.msra.mxu0 %v176
    %257 = vmatpush.msra.mxu0 %v175
    %258 = vmatpush.msra.mxu0 %v174
    %259 = vmatpush.msra.mxu0 %v173
    %260 = vmatpush.msra.mxu0 %v172
    %261 = vmatpush.msra.mxu0 %v171
    %262 = vmatpush.msra.mxu0 %v170
    %263 = vmatpush.msra.mxu0 %v169
    %264 = vmatpush.msra.mxu0 %v168
    %265 = vmatpush.msra.mxu0 %v167
    %266 = vmatpush.msra.mxu0 %v166
    %267 = vmatpush.msra.mxu0 %v165
    %268 = vmatpush.msra.mxu0 %v164
    %269 = vmatmul.f32.gmra.mxu0 %v250
    %v270 = vpop.f32.mrf.mxu0
    %v271 = vadd.f32 0.0, %v270
    %272 = vdwg.mxu0
    %v273 = vadd.f32 %v252, %v271
    %v274 = vtanh.pop %v273
    %275 = vst [vmem:[#allocation3 + $0x18] sm:$0xff] %v274
    %v276 = vld [vmem:[#allocation2 + $0x20] sm:$0xff]
    %277 = vmatpush.msra.mxu0 %v179
    %278 = vmatpush.msra.mxu0 %v178
    %279 = vmatpush.msra.mxu0 %v177
    %280 = vmatpush.msra.mxu0 %v176
    %281 = vmatpush.msra.mxu0 %v175
    %282 = vmatpush.msra.mxu0 %v174
    %283 = vmatpush.msra.mxu0 %v173
    %284 = vmatpush.msra.mxu0 %v172
    %285 = vmatpush.msra.mxu0 %v171
    %286 = vmatpush.msra.mxu0 %v170
    %287 = vmatpush.msra.mxu0 %v169
    %288 = vmatpush.msra.mxu0 %v168
    %289 = vmatpush.msra.mxu0 %v167
    %290 = vmatpush.msra.mxu0 %v166
    %291 = vmatpush.msra.mxu0 %v165
    %292 = vmatpush.msra.mxu0 %v164
    %293 = vmatmul.f32.gmra.mxu0 %v274
    %v294 = vpop.f32.mrf.mxu0
    %v295 = vadd.f32 0.0, %v294
    %296 = vdwg.mxu0
    %v297 = vadd.f32 %v276, %v295
    %v298 = vtanh.pop %v297
    %299 = vst [vmem:[#allocation3 + $0x20] sm:$0xff] %v298
    %v300 = vld [vmem:[#allocation2 + $0x28] sm:$0xff]
    %301 = vmatpush.msra.mxu0 %v179
    %302 = vmatpush.msra.mxu0 %v178
    %303 = vmatpush.msra.mxu0 %v177
    %304 = vmatpush.msra.mxu0 %v176
    %305 = vmatpush.msra.mxu0 %v175
    %306 = vmatpush.msra.mxu0 %v174
    %307 = vmatpush.msra.mxu0 %v173
    %308 = vmatpush.msra.mxu0 %v172
    %309 = vmatpush.msra.mxu0 %v171
    %310 = vmatpush.msra.mxu0 %v170
    %311 = vmatpush.msra.mxu0 %v169
    %312 = vmatpush.msra.mxu0 %v168
    %313 = vmatpush.msra.mxu0 %v167
    %314 = vmatpush.msra.mxu0 %v166
    %315 = vmatpush.msra.mxu0 %v165
    %316 = vmatpush.msra.mxu0 %v164
    %317 = vmatmul.f32.gmra.mxu0 %v298
    %v318 = vpop.f32.mrf.mxu0
    %v319 = vadd.f32 0.0, %v318
    %320 = vdwg.mxu0
    %v321 = vadd.f32 %v300, %v319
    %v322 = vtanh.pop %v321
    %323 = vst [vmem:[#allocation3 + $0x28] sm:$0xff] %v322
    %v324 = vld [vmem:[#allocation2 + $0x30] sm:$0xff]
    %325 = vmatpush.msra.mxu0 %v179
    %326 = vmatpush.msra.mxu0 %v178
    %327 = vmatpush.msra.mxu0 %v177
    %328 = vmatpush.msra.mxu0 %v176
    %329 = vmatpush.msra.mxu0 %v175
    %330 = vmatpush.msra.mxu0 %v174
    %331 = vmatpush.msra.mxu0 %v173
    %332 = vmatpush.msra.mxu0 %v172
    %333 = vmatpush.msra.mxu0 %v171
    %334 = vmatpush.msra.mxu0 %v170
    %335 = vmatpush.msra.mxu0 %v169
    %336 = vmatpush.msra.mxu0 %v168
    %337 = vmatpush.msra.mxu0 %v167
    %338 = vmatpush.msra.mxu0 %v166
    %339 = vmatpush.msra.mxu0 %v165
    %340 = vmatpush.msra.mxu0 %v164
    %341 = vmatmul.f32.gmra.mxu0 %v322
    %v342 = vpop.f32.mrf.mxu0
    %v343 = vadd.f32 0.0, %v342
    %344 = vdwg.mxu0
    %v345 = vadd.f32 %v324, %v343
    %v346 = vtanh.pop %v345
    %347 = vst [vmem:[#allocation3 + $0x30] sm:$0xff] %v346
    %v348 = vld [vmem:[#allocation2 + $0x38] sm:$0xff]
    %349 = vmatpush.msra.mxu0 %v179
    %350 = vmatpush.msra.mxu0 %v178
    %351 = vmatpush.msra.mxu0 %v177
    %352 = vmatpush.msra.mxu0 %v176
    %353 = vmatpush.msra.mxu0 %v175
    %354 = vmatpush.msra.mxu0 %v174
    %355 = vmatpush.msra.mxu0 %v173
    %356 = vmatpush.msra.mxu0 %v172
    %357 = vmatpush.msra.mxu0 %v171
    %358 = vmatpush.msra.mxu0 %v170
    %359 = vmatpush.msra.mxu0 %v169
    %360 = vmatpush.msra.mxu0 %v168
    %361 = vmatpush.msra.mxu0 %v167
    %362 = vmatpush.msra.mxu0 %v166
    %363 = vmatpush.msra.mxu0 %v165
    %364 = vmatpush.msra.mxu0 %v164
    %365 = vmatmul.f32.gmra.mxu0 %v346
    %v366 = vpop.f32.mrf.mxu0
    %v367 = vadd.f32 0.0, %v366
    %368 = vdwg.mxu0
    %v369 = vadd.f32 %v348, %v367
    %v370 = vtanh.pop %v369
    %371 = vst [vmem:[#allocation3 + $0x38] sm:$0xff] %v370
    %v372 = vld [vmem:[#allocation3] sm:$0xff]
    %v373 = vld [vmem:[#allocation3 + $0x8] sm:$0xff]
    %v374 = vld [vmem:[#allocation3 + $0x10] sm:$0xff]
    %v375 = vld [vmem:[#allocation3 + $0x18] sm:$0xff]
    %v376 = vld [vmem:[#allocation3 + $0x20] sm:$0xff]
    %v377 = vld [vmem:[#allocation3 + $0x28] sm:$0xff]
    %v378 = vld [vmem:[#allocation3 + $0x30] sm:$0xff]
    %v379 = vld [vmem:[#allocation3 + $0x38] sm:$0xff]
    %v380 = vld [vmem:[#allocation7] sm:$0xff]
    %v381 = vld [vmem:[#allocation7 + $0x8] sm:$0xff]
    %v382 = vld [vmem:[#allocation7 + $0x10] sm:$0xff]
    %v383 = vld [vmem:[#allocation7 + $0x18] sm:$0xff]
    %v384 = vld [vmem:[#allocation7 + $0x20] sm:$0xff]
    %v385 = vld [vmem:[#allocation7 + $0x28] sm:$0xff]
    %v386 = vld [vmem:[#allocation7 + $0x30] sm:$0xff]
    %v387 = vld [vmem:[#allocation7 + $0x38] sm:$0xff]
    %v388 = vld [vmem:[#allocation7 + $0x40] sm:$0xff]
    %v389 = vld [vmem:[#allocation7 + $0x48] sm:$0xff]
    %v390 = vld [vmem:[#allocation7 + $0x50] sm:$0xff]
    %v391 = vld [vmem:[#allocation7 + $0x58] sm:$0xff]
    %v392 = vld [vmem:[#allocation7 + $0x60] sm:$0xff]
    %v393 = vld [vmem:[#allocation7 + $0x68] sm:$0xff]
    %v394 = vld [vmem:[#allocation7 + $0x70] sm:$0xff]
    %v395 = vld [vmem:[#allocation7 + $0x78] sm:$0xff]
    %396 = vmatpush.msra.mxu0 %v395
    %397 = vmatpush.msra.mxu0 %v394
    %398 = vmatpush.msra.mxu0 %v393
    %399 = vmatpush.msra.mxu0 %v392
    %400 = vmatpush.msra.mxu0 %v391
    %401 = vmatpush.msra.mxu0 %v390
    %402 = vmatpush.msra.mxu0 %v389
    %403 = vmatpush.msra.mxu0 %v388
    %404 = vmatpush.msra.mxu0 %v387
    %405 = vmatpush.msra.mxu0 %v386
    %406 = vmatpush.msra.mxu0 %v385
    %407 = vmatpush.msra.mxu0 %v384
    %408 = vmatpush.msra.mxu0 %v383
    %409 = vmatpush.msra.mxu0 %v382
    %410 = vmatpush.msra.mxu0 %v381
    %411 = vmatpush.msra.mxu0 %v380
    %412 = vmatmul.f32.gmra.mxu0 %v372
    %v413 = vpop.f32.mrf.mxu0
    %v414 = vadd.f32 0.0, %v413
    %415 = vmatmul.f32.gmra.mxu0 %v373
    %v416 = vpop.f32.mrf.mxu0
    %v417 = vadd.f32 0.0, %v416
    %418 = vmatmul.f32.gmra.mxu0 %v374
    %v419 = vpop.f32.mrf.mxu0
    %v420 = vadd.f32 0.0, %v419
    %421 = vmatmul.f32.gmra.mxu0 %v375
    %v422 = vpop.f32.mrf.mxu0
    %v423 = vadd.f32 0.0, %v422
    %424 = vmatmul.f32.gmra.mxu0 %v376
    %v425 = vpop.f32.mrf.mxu0
    %v426 = vadd.f32 0.0, %v425
    %427 = vmatmul.f32.gmra.mxu0 %v377
    %v428 = vpop.f32.mrf.mxu0
    %v429 = vadd.f32 0.0, %v428
    %430 = vmatmul.f32.gmra.mxu0 %v378
    %v431 = vpop.f32.mrf.mxu0
    %v432 = vadd.f32 0.0, %v431
    %433 = vmatmul.f32.gmra.mxu0 %v379
    %v434 = vpop.f32.mrf.mxu0
    %v435 = vadd.f32 0.0, %v434
    %436 = vdwg.mxu0
    %v437 = vld [vmem:[#allocation9] sm:$0xff]
    %v438 = vld [vmem:[#allocation9 + $0x8] sm:$0xff]
    %v439 = vld [vmem:[#allocation9 + $0x10] sm:$0xff]
    %v440 = vld [vmem:[#allocation9 + $0x18] sm:$0xff]
    %v441 = vld [vmem:[#allocation9 + $0x20] sm:$0xff]
    %v442 = vld [vmem:[#allocation9 + $0x28] sm:$0xff]
    %v443 = vld [vmem:[#allocation9 + $0x30] sm:$0xff]
    %v444 = vld [vmem:[#allocation9 + $0x38] sm:$0xff]
    %v445 = vld [vmem:[#allocation9 + $0x40] sm:$0xff]
    %v446 = vld [vmem:[#allocation9 + $0x48] sm:$0xff]
    %v447 = vld [vmem:[#allocation9 + $0x50] sm:$0xff]
    %v448 = vld [vmem:[#allocation9 + $0x58] sm:$0xff]
    %v449 = vld [vmem:[#allocation9 + $0x60] sm:$0xff]
    %v450 = vld [vmem:[#allocation9 + $0x68] sm:$0xff]
    %v451 = vld [vmem:[#allocation9 + $0x70] sm:$0xff]
    %v452 = vld [vmem:[#allocation9 + $0x78] sm:$0xff]
    %453 = vmatpush.msra.mxu0 %v452
    %454 = vmatpush.msra.mxu0 %v451
    %455 = vmatpush.msra.mxu0 %v450
    %456 = vmatpush.msra.mxu0 %v449
    %457 = vmatpush.msra.mxu0 %v448
    %458 = vmatpush.msra.mxu0 %v447
    %459 = vmatpush.msra.mxu0 %v446
    %460 = vmatpush.msra.mxu0 %v445
    %461 = vmatpush.msra.mxu0 %v444
    %462 = vmatpush.msra.mxu0 %v443
    %463 = vmatpush.msra.mxu0 %v442
    %464 = vmatpush.msra.mxu0 %v441
    %465 = vmatpush.msra.mxu0 %v440
    %466 = vmatpush.msra.mxu0 %v439
    %467 = vmatpush.msra.mxu0 %v438
    %468 = vmatpush.msra.mxu0 %v437
    %469 = vmatmul.f32.gmra.mxu0 %v372
    %v470 = vpop.f32.mrf.mxu0
    %v471 = vadd.f32 0.0, %v470
    %472 = vmatmul.f32.gmra.mxu0 %v373
    %v473 = vpop.f32.mrf.mxu0
    %v474 = vadd.f32 0.0, %v473
    %475 = vmatmul.f32.gmra.mxu0 %v374
    %v476 = vpop.f32.mrf.mxu0
    %v477 = vadd.f32 0.0, %v476
    %478 = vmatmul.f32.gmra.mxu0 %v375
    %v479 = vpop.f32.mrf.mxu0
    %v480 = vadd.f32 0.0, %v479
    %481 = vmatmul.f32.gmra.mxu0 %v376
    %v482 = vpop.f32.mrf.mxu0
    %v483 = vadd.f32 0.0, %v482
    %484 = vmatmul.f32.gmra.mxu0 %v377
    %v485 = vpop.f32.mrf.mxu0
    %v486 = vadd.f32 0.0, %v485
    %487 = vmatmul.f32.gmra.mxu0 %v378
    %v488 = vpop.f32.mrf.mxu0
    %v489 = vadd.f32 0.0, %v488
    %490 = vmatmul.f32.gmra.mxu0 %v379
    %v491 = vpop.f32.mrf.mxu0
    %v492 = vadd.f32 0.0, %v491
    %493 = vdwg.mxu0
    %v494 = vld [vmem:[%s6] sm:$0x1]
    %v495 = vadd.f32 %v414, %v492
    %v497 = vperm.slane %v494, 0
    %v499 = vadd.f32 %v495, %v497
    %500 = vst [vmem:[#allocation10] sm:$0xff] %v499
    %v501 = vadd.f32 %v417, %v489
    %v502 = vadd.f32 %v501, %v497
    %503 = vst [vmem:[#allocation10 + $0x8] sm:$0xff] %v502
    %v504 = vadd.f32 %v420, %v486
    %v505 = vadd.f32 %v504, %v497
    %506 = vst [vmem:[#allocation10 + $0x10] sm:$0xff] %v505
    %v507 = vadd.f32 %v423, %v483
    %v508 = vadd.f32 %v507, %v497
    %509 = vst [vmem:[#allocation10 + $0x18] sm:$0xff] %v508
    %v510 = vadd.f32 %v426, %v480
    %v511 = vadd.f32 %v510, %v497
    %512 = vst [vmem:[#allocation10 + $0x20] sm:$0xff] %v511
    %v513 = vadd.f32 %v429, %v477
    %v514 = vadd.f32 %v513, %v497
    %515 = vst [vmem:[#allocation10 + $0x28] sm:$0xff] %v514
    %v516 = vadd.f32 %v432, %v474
    %v517 = vadd.f32 %v516, %v497
    %518 = vst [vmem:[#allocation10 + $0x30] sm:$0xff] %v517
    %v519 = vadd.f32 %v435, %v471
    %v520 = vadd.f32 %v519, %v497
    %521 = vst [vmem:[#allocation10 + $0x38] sm:$0xff] %v520
    // Predicated region
    $region42: #{tpu_custom_call.1} parent=1 // pred_check
      _
    $region43: #{tpu_custom_call.1} parent=1 // pred_check_branch
      %523 = sbr.rel (0) target = $region45
    $region44: #{tpu_custom_call.1} parent=1 // pred_region
      %525 = vsyncadd [#allocation6], 0
      %s526 = sshll.u32 [#allocation10], 4
      %s527 = int_to_ptr.vmem [resolvable:$true] %s526
      %s528 = sshll.u32 %s7, 4
      %s529 = int_to_ptr.hbm [resolvable:$true] %s528
      %534 = dma.vmem_to_hbm [thread:$0]  %s527, 1024, %s529, [#allocation6], 128, 128, 8
    $region45: #{tpu_custom_call.1} parent=1 // pred_fallthru
      _
    // Predicated region
    $region46: #{tpu_custom_call.1} parent=1 // pred_check
      _
    $region47: #{tpu_custom_call.1} parent=1 // pred_check_branch
      %536 = sbr.rel (0) target = $region49
    $region48: #{tpu_custom_call.1} parent=1 // pred_region
      %538 = dma.done [#allocation6], 1024
    $region49: #{tpu_custom_call.1} parent=1 // pred_fallthru
      _
    %539 = vsyncpa [#allocation5], 1
    %540 = vsyncpa [#allocation8], 1
    %541 = vsyncpa [#allocation6], 1

</llo_original>
